<compile_context>
chip_gen: v7x
topology: tpu7x:2x2x1
jax: 0.10.0
libtpu: 0.0.40
codegen_flags: <defaults>
</compile_context>

<pallas_src>
import functools

import jax
import jax.numpy as jnp
from jax.experimental import pallas as pl
from jax.experimental.pallas import tpu as pltpu

LANE = 128
SUBLANE = 8


def mlp_kernel(xt_ref, w1_ref, b1_ref, w2_ref, b2_ref, o_ref):
    # One batch tile, batch on the lane axis:
    #   h = relu(W1 @ x_t + b1) ; o = W2 @ h + b2
    xt = xt_ref[...]                                    # [S,  TB] bf16
    h = jnp.dot(w1_ref[...], xt,
                preferred_element_type=jnp.float32)     # [H,  TB] f32 (MXU)
    h = jnp.maximum(h + b1_ref[...], 0.0)               # bias + ReLU in f32 (VPU)
    o = jnp.dot(w2_ref[...], h.astype(jnp.bfloat16),
                preferred_element_type=jnp.float32)     # [Ap, TB] f32 (MXU)
    o_ref[...] = o + b2_ref[...]                        # lane-dense f32 store


def _round_up(n, m):
    return -(-n // m) * m


def _pick_tile(bp, max_tb=4096):
    # Single step for small B (no per-step overhead); otherwise the largest
    # 128-aligned tile that evenly divides the batch.
    if bp <= max_tb:
        return bp
    for cand in (4096, 2048, 1024, 512, 256, 128):
        if bp % cand == 0:
            return cand
    return LANE


def prepare_params(w1, b1, w2, b2):
    """One-time prep. PyTorch-native shapes: w1 [H,S], b1 [H], w2 [A,H], b2 [A].

    Pads the action dim to 8 sublanes with zeros (padded output rows are
    exactly 0), casts weights to bf16 (MXU operand dtype); biases stay f32 as
    [., 1] columns for lane-broadcast inside the kernel.
    """
    H, S = w1.shape
    A = w2.shape[0]
    Ap = _round_up(A, SUBLANE)
    w1b = w1.astype(jnp.bfloat16)                                        # [H, S]
    b1c = b1.astype(jnp.float32).reshape(H, 1)                           # [H, 1]
    w2p = jnp.zeros((Ap, H), jnp.bfloat16).at[:A].set(w2.astype(jnp.bfloat16))
    b2p = jnp.zeros((Ap, 1), jnp.float32).at[:A, 0].set(b2.astype(jnp.float32))
    return w1b, b1c, w2p, b2p


@functools.partial(jax.jit, static_argnames=("tb",))
def mlp_forward_t(xt, w1, b1, w2p, b2p, *, tb=None):
    """Fused MLP forward on transposed activations.

    xt:  [S, B]  bf16, batch on the lane axis, B % 128 == 0
    w1:  [H, S]  bf16,  b1:  [H, 1]  f32
    w2p: [Ap, H] bf16,  b2p: [Ap, 1] f32  (action dim zero-padded to 8)
    Returns padded transposed logits [Ap, B] f32 (rows >= A are exactly 0);
    consumers index out[:A].T if they need the [B, A] view.
    """
    S, B = xt.shape
    H = w1.shape[0]
    Ap = w2p.shape[0]
    assert B % LANE == 0, "batch must be a multiple of 128 (pad once in caller)"
    if tb is None:
        tb = _pick_tile(B)
    assert B % tb == 0
    grid = (B // tb,)

    flops = 2 * B * (S * H + H * Ap)
    bytes_accessed = (xt.size * 2 + w1.size * 2 + w2p.size * 2
                      + b1.size * 4 + b2p.size * 4 + Ap * B * 4)

    return pl.pallas_call(
        mlp_kernel,
        out_shape=jax.ShapeDtypeStruct((Ap, B), jnp.float32),
        grid=grid,
        in_specs=[
            # Activations: new batch tile each grid step (auto double-buffered).
            pl.BlockSpec((S, tb), lambda i: (0, i)),
            # Weights / biases: constant index_map -> DMA'd once, VMEM-resident.
            pl.BlockSpec((H, S), lambda i: (0, 0)),
            pl.BlockSpec((H, 1), lambda i: (0, 0)),
            pl.BlockSpec((Ap, H), lambda i: (0, 0)),
            pl.BlockSpec((Ap, 1), lambda i: (0, 0)),
        ],
        out_specs=pl.BlockSpec((Ap, tb), lambda i: (0, i)),
        compiler_params=pltpu.CompilerParams(
            # Batch tiles are independent -> shard across TensorCores (v7x).
            dimension_semantics=("parallel",),
        ),
        cost_estimate=pl.CostEstimate(
            flops=flops, transcendentals=0, bytes_accessed=bytes_accessed),
    )(xt, w1, b1, w2p, b2p)


def init_params(key, state_size, hidden_layer, action_size):
    # Deterministic init mimicking nn.Linear's U(-1/sqrt(fan_in), 1/sqrt(fan_in)),
    # PyTorch-native [out, in] weight layout.
    k1, k2, k3, k4 = jax.random.split(key, 4)
    bound1 = 1.0 / jnp.sqrt(jnp.float32(state_size))
    bound2 = 1.0 / jnp.sqrt(jnp.float32(hidden_layer))
    w1 = jax.random.uniform(k1, (hidden_layer, state_size), jnp.float32, -bound1, bound1)
    b1 = jax.random.uniform(k2, (hidden_layer,), jnp.float32, -bound1, bound1)
    w2 = jax.random.uniform(k3, (action_size, hidden_layer), jnp.float32, -bound2, bound2)
    b2 = jax.random.uniform(k4, (action_size,), jnp.float32, -bound2, bound2)
    return w1, b1, w2, b2


if __name__ == "__main__":
    state_size = 4       # e.g. CartPole observation dim
    action_size = 2
    hidden_layer = 32
    batch = 256          # batched states (vmapped envs / timesteps)

    key = jax.random.PRNGKey(0)
    kx, kp = jax.random.split(key)
    x = jax.random.normal(kx, (batch, state_size), jnp.float32)          # [B, S]
    w1, b1, w2, b2 = init_params(kp, state_size, hidden_layer, action_size)

    # One-time layout prep outside the hot path: weights cast/padded, x
    # transposed + cast once so batch is the lane axis (no per-call padding).
    w1b, b1c, w2p, b2p = prepare_params(w1, b1, w2, b2)
    xt = x.T.astype(jnp.bfloat16)                                        # [S, B]

    out_t = mlp_forward_t(xt, w1b, b1c, w2p, b2p)                        # [Ap, B]
    jax.block_until_ready(out_t)

    logits = out_t[:action_size].T                                       # [B, A]

    # Pure-JAX f32 reference (kernel uses bf16 matmul operands -> loose tol).
    ref = jnp.maximum(x @ w1.T + b1[None, :], 0.0) @ w2.T + b2[None, :]
    assert logits.shape == (batch, action_size)
    assert jnp.allclose(logits, ref, atol=5e-2, rtol=5e-2), (
        float(jnp.max(jnp.abs(logits - ref))))

    print("KERNEL_OK")
</pallas_src>

<mosaic_0001>
module attributes {stable_mosaic.version = 11 : i64} {
  func.func @mlp_kernel(%arg0: i32, %arg1: memref<4x256xbf16, #tpu.memory_space<vmem>>, %arg2: memref<32x4xbf16, #tpu.memory_space<vmem>>, %arg3: memref<32x1xf32, #tpu.memory_space<vmem>>, %arg4: memref<8x32xbf16, #tpu.memory_space<vmem>>, %arg5: memref<8x1xf32, #tpu.memory_space<vmem>>, %arg6: memref<8x256xf32, #tpu.memory_space<vmem>>) attributes {dimension_semantics = [#tpu.dimension_semantics<parallel>], iteration_bounds = array<i64: 1>, scalar_prefetch = 0 : i64, scratch_operands = 0 : i64, tpu.core_type = #tpu.core_type<tc>, window_params = [{transform_indices = @transform_0, window_bounds = array<i64: 4, 256>}, {pipeline_mode = #tpu.pipeline_mode<synchronous>, transform_indices = @transform_1, window_bounds = array<i64: 32, 4>}, {pipeline_mode = #tpu.pipeline_mode<synchronous>, transform_indices = @transform_2, window_bounds = array<i64: 32, 1>}, {pipeline_mode = #tpu.pipeline_mode<synchronous>, transform_indices = @transform_3, window_bounds = array<i64: 8, 32>}, {pipeline_mode = #tpu.pipeline_mode<synchronous>, transform_indices = @transform_4, window_bounds = array<i64: 8, 1>}, {transform_indices = @transform_5, window_bounds = array<i64: 8, 256>}]} {
    %c0 = arith.constant 0 : index
    %c0_0 = arith.constant 0 : index
    %0 = vector.load %arg1[%c0, %c0_0] : memref<4x256xbf16, #tpu.memory_space<vmem>>, vector<4x256xbf16>
    %c0_1 = arith.constant 0 : index
    %c0_2 = arith.constant 0 : index
    %1 = vector.load %arg2[%c0_1, %c0_2] : memref<32x4xbf16, #tpu.memory_space<vmem>>, vector<32x4xbf16>
    %cst = arith.constant dense<0.000000e+00> : vector<32x256xf32>
    %2 = tpu.matmul %1, %0, %cst {dimension_numbers = #tpu.dot_dimension_numbers<[1], [0], [0], [1], [0, 0, 1, 1], [], []>} : vector<32x4xbf16>, vector<4x256xbf16>, vector<32x256xf32> -> vector<32x256xf32>
    %c0_3 = arith.constant 0 : index
    %c0_4 = arith.constant 0 : index
    %3 = vector.load %arg3[%c0_3, %c0_4] : memref<32x1xf32, #tpu.memory_space<vmem>>, vector<32x1xf32>
    %4 = vector.broadcast %3 : vector<32x1xf32> to vector<32x256xf32>
    %5 = arith.addf %2, %4 : vector<32x256xf32>
    %cst_5 = arith.constant 0.000000e+00 : f32
    %6 = vector.broadcast %cst_5 : f32 to vector<32x256xf32>
    %7 = arith.maximumf %5, %6 : vector<32x256xf32>
    %c0_6 = arith.constant 0 : index
    %c0_7 = arith.constant 0 : index
    %8 = vector.load %arg4[%c0_6, %c0_7] : memref<8x32xbf16, #tpu.memory_space<vmem>>, vector<8x32xbf16>
    %9 = arith.truncf %7 : vector<32x256xf32> to vector<32x256xbf16>
    %cst_8 = arith.constant dense<0.000000e+00> : vector<8x256xf32>
    %10 = tpu.matmul %8, %9, %cst_8 {dimension_numbers = #tpu.dot_dimension_numbers<[1], [0], [0], [1], [0, 0, 1, 1], [], []>} : vector<8x32xbf16>, vector<32x256xbf16>, vector<8x256xf32> -> vector<8x256xf32>
    %c0_9 = arith.constant 0 : index
    %c0_10 = arith.constant 0 : index
    %11 = vector.load %arg5[%c0_9, %c0_10] : memref<8x1xf32, #tpu.memory_space<vmem>>, vector<8x1xf32>
    %12 = vector.broadcast %11 : vector<8x1xf32> to vector<8x256xf32>
    %13 = arith.addf %10, %12 : vector<8x256xf32>
    %c0_11 = arith.constant 0 : index
    %c0_12 = arith.constant 0 : index
    %14 = vector.load %arg6[%c0_11, %c0_12] : memref<8x256xf32, #tpu.memory_space<vmem>>, vector<8x256xf32>
    tpu.vector_store %arg6[%c0_11, %c0_12], %13 {strides = array<i32>} : memref<8x256xf32, #tpu.memory_space<vmem>>, vector<8x256xf32>,
    return
  }
  func.func @transform_0(%arg0: i32) -> (i32, i32) {
    %c0_i32 = arith.constant 0 : i32
    %c0_i32_0 = arith.constant 0 : i32
    return %c0_i32, %arg0 : i32, i32
  }
  func.func @transform_1(%arg0: i32) -> (i32, i32) {
    %c0_i32 = arith.constant 0 : i32
    %c0_i32_0 = arith.constant 0 : i32
    %c0_i32_1 = arith.constant 0 : i32
    return %c0_i32, %c0_i32_0 : i32, i32
  }
  func.func @transform_2(%arg0: i32) -> (i32, i32) {
    %c0_i32 = arith.constant 0 : i32
    %c0_i32_0 = arith.constant 0 : i32
    %c0_i32_1 = arith.constant 0 : i32
    return %c0_i32, %c0_i32_0 : i32, i32
  }
  func.func @transform_3(%arg0: i32) -> (i32, i32) {
    %c0_i32 = arith.constant 0 : i32
    %c0_i32_0 = arith.constant 0 : i32
    %c0_i32_1 = arith.constant 0 : i32
    return %c0_i32, %c0_i32_0 : i32, i32
  }
  func.func @transform_4(%arg0: i32) -> (i32, i32) {
    %c0_i32 = arith.constant 0 : i32
    %c0_i32_0 = arith.constant 0 : i32
    %c0_i32_1 = arith.constant 0 : i32
    return %c0_i32, %c0_i32_0 : i32, i32
  }
  func.func @transform_5(%arg0: i32) -> (i32, i32) {
    %c0_i32 = arith.constant 0 : i32
    %c0_i32_0 = arith.constant 0 : i32
    return %c0_i32, %arg0 : i32, i32
  }
}

</mosaic_0001>

<llo_original>
// kernel: mlp_forward_t.1
$region0: #{mlp_forward_t.1}
  #allocation0 [shape = 'u32[]', space=smem, size = 0x4, offset = 0x4, fixed_abs, tag = 'smem constant byte address 0x4 - core index']
  #allocation1 [shape = 'u32[144,128]{1,0:T(1,128)}', space=vmem, size = 0x12000, scoped, tag = 'internal scratch']
  %s0 = inlined_call_operand.vmem [shape: bf16[4,256], index: 0, kind: input, shape index: {}]
  %s1 = inlined_call_operand.vmem [shape: bf16[32,4], index: 1, kind: input, shape index: {}]
  %s2 = inlined_call_operand.vmem [shape: f32[32,1], index: 2, kind: input, shape index: {}]
  %s3 = inlined_call_operand.vmem [shape: bf16[8,32], index: 3, kind: input, shape index: {}]
  %s4 = inlined_call_operand.vmem [shape: f32[8,1], index: 4, kind: input, shape index: {}]
  %s5 = inlined_call_operand.hbm [shape: f32[8,256], index: 5, kind: output, shape index: {}]
  %s6 = sld [smem:[#allocation0]]
  $region30: #{mlp_forward_t.1} parent=0
    _
  %s8 = ssub.s32 1, %s6
  %s9 = scalar_select 0, %s8, %s6
  $region1: #{mlp_forward_t.1} parent=0
    #allocation2 [shape = 'u8[8192]{0}', space=vmem, size = 0x2000, scoped, tag = 'output window, operand 0, single buffered']
    #allocation3 [shape = 's32[1]{0}', space=sflag, size = 0x4, scoped, tag = 'scoped memory for mlp_forward_t.1']
    %10 = vsyncpa [#allocation3], 0
    // Predicated region
    $region2: #{mlp_forward_t.1} parent=1 // pred_check
      _
    $region3: #{mlp_forward_t.1} parent=1 // pred_check_branch
      %12 = sbr.rel (0) target = $region5
    $region4: #{mlp_forward_t.1} parent=1 // pred_region
      _
    $region5: #{mlp_forward_t.1} parent=1 // pred_fallthru
      _
    // Predicated region
    $region6: #{mlp_forward_t.1} parent=1 // pred_check
      _
    $region7: #{mlp_forward_t.1} parent=1 // pred_check_branch
      %14 = sbr.rel (0) target = $region9
    $region8: #{mlp_forward_t.1} parent=1 // pred_region
      _
    $region9: #{mlp_forward_t.1} parent=1 // pred_fallthru
      _
    // Predicated region
    $region10: #{mlp_forward_t.1} parent=1 // pred_check
      _
    $region11: #{mlp_forward_t.1} parent=1 // pred_check_branch
      %16 = sbr.rel (0) target = $region13
    $region12: #{mlp_forward_t.1} parent=1 // pred_region
      _
    $region13: #{mlp_forward_t.1} parent=1 // pred_fallthru
      _
    // Predicated region
    $region14: #{mlp_forward_t.1} parent=1 // pred_check
      _
    $region15: #{mlp_forward_t.1} parent=1 // pred_check_branch
      %18 = sbr.rel (0) target = $region17
    $region16: #{mlp_forward_t.1} parent=1 // pred_region
      _
    $region17: #{mlp_forward_t.1} parent=1 // pred_fallthru
      _
    // Predicated region
    $region18: #{mlp_forward_t.1} parent=1 // pred_check
      _
    $region19: #{mlp_forward_t.1} parent=1 // pred_check_branch
      %20 = sbr.rel (0) target = $region21
    $region20: #{mlp_forward_t.1} parent=1 // pred_region
      _
    $region21: #{mlp_forward_t.1} parent=1 // pred_fallthru
      _
    %v22 = vld [vmem:[%s0] sm:$0xf]
    %v23 = vld [vmem:[%s1] sm:$0xf]
    %v24 = vld [vmem:[%s1 + $0x4] sm:$0xf]
    %v25 = vld [vmem:[%s1 + $0x8] sm:$0xf]
    %v26 = vld [vmem:[%s1 + $0xc] sm:$0xf]
    %v27 = vld [vmem:[%s2] sm:$0xff]
    %v28 = vld [vmem:[%s2 + $0x8] sm:$0xff]
    %v29 = vld [vmem:[%s2 + $0x10] sm:$0xff]
    %v30 = vld [vmem:[%s2 + $0x18] sm:$0xff]
    %32 = vset.pattern.permute.xlu0 0
    %33 = vperm.xlu0 %32, %v27
    %v34 = vpop.permute.xlu0 %33
    %37 = vset.pattern.permute.xlu0 0
    %38 = vperm.xlu0 %37, %v28
    %v39 = vpop.permute.xlu0 %38
    %42 = vset.pattern.permute.xlu0 0
    %43 = vperm.xlu0 %42, %v29
    %v44 = vpop.permute.xlu0 %43
    %47 = vset.pattern.permute.xlu0 0
    %48 = vperm.xlu0 %47, %v30
    %v49 = vpop.permute.xlu0 %48
    %v55 = vunpack.c.l.b16 %v23
    %v56 = vunpack.c.l.b16 %v24
    %v57 = vunpack.c.l.b16 %v25
    %v58 = vunpack.c.l.b16 %v26
    %v59 = vpack.c.b16 %v56, %v55
    %v60 = vpack.c.b16 %v58, %v57
    %v63 = vunpack.c.l.s4 1983009808
    %v64 = vunpack.c.0.s8 %v63
    %v65 = vlaneseq
    %v66 = vshrl.u32 %v65, 7
    %v67 = vsub.s32 %v64, %v66
    %v68 = vrot.slane %v22, %v67
    %v69 = vcombine.high %v68, %v68
    %vm70 = vcmask 31744
    %v72 = vsel %vm70, %v59, 0
    %v75 = vsel %vm70, %v60, 0
    %vm77 = vcmask 1041408
    %v79 = vsel %vm77, %v68, 0
    %v82 = vsel %vm77, %v69, 0
    %84 = vmatprep.subr.bf16.mxu0 %v82
    %85 = vmatpush1.bf16.msra.mxu0 %v79
    %86 = vmatprep.subr.bf16.mxu0 0
    %87 = vmatpush1.bf16.msra.mxu0 0
    %88 = vmatprep.subr.bf16.mxu0 0
    %89 = vmatpush1.bf16.msra.mxu0 0
    %90 = vmatprep.subr.bf16.mxu0 0
    %91 = vmatpush1.bf16.msra.mxu0 0
    %92 = vmatprep.subr.bf16.mxu0 0
    %93 = vmatpush1.bf16.msra.mxu0 0
    %94 = vmatprep.subr.bf16.mxu0 0
    %95 = vmatpush1.bf16.msra.mxu0 0
    %96 = vmatprep.subr.bf16.mxu0 0
    %97 = vmatpush1.bf16.msra.mxu0 0
    %98 = vmatprep.subr.bf16.mxu0 0
    %99 = vmatpush1.bf16.msra.mxu0 0
    %100 = vmatprep.subr.bf16.mxu0 0
    %101 = vmatpush1.bf16.msra.mxu0 0
    %102 = vmatprep.subr.bf16.mxu0 0
    %103 = vmatpush1.bf16.msra.mxu0 0
    %104 = vmatprep.subr.bf16.mxu0 0
    %105 = vmatpush1.bf16.msra.mxu0 0
    %106 = vmatprep.subr.bf16.mxu0 0
    %107 = vmatpush1.bf16.msra.mxu0 0
    %108 = vmatprep.subr.bf16.mxu0 0
    %109 = vmatpush1.bf16.msra.mxu0 0
    %110 = vmatprep.subr.bf16.mxu0 0
    %111 = vmatpush1.bf16.msra.mxu0 0
    %112 = vmatprep.subr.bf16.mxu0 0
    %113 = vmatpush1.bf16.msra.mxu0 0
    %114 = vmatprep.subr.bf16.mxu0 0
    %115 = vmatpush1.bf16.msra.mxu0 0
    %116 = vmatprep.mubr.bf16.mxu0 0
    %117 = vmatmul.mubr.bf16.gmra.mrb[0].mxu0 %v72
    %v118 = vpop.f32.mrb[0].mxu0
    %v119 = vadd.f32 %v34, %v118
    %v120 = vpop.f32.mrb[0].mxu0
    %v121 = vadd.f32 %v34, %v120
    %v122 = vpop.f32.mrb[0].mxu0
    %v123 = vadd.f32 %v39, %v122
    %v124 = vpop.f32.mrb[0].mxu0
    %v125 = vadd.f32 %v39, %v124
    %126 = vmatprep.mubr.bf16.mxu0 0
    %127 = vmatmul.mubr.bf16.gmra.mrb[0].mxu0 %v75
    %v128 = vpop.f32.mrb[0].mxu0
    %v129 = vadd.f32 %v44, %v128
    %v130 = vpop.f32.mrb[0].mxu0
    %v131 = vadd.f32 %v44, %v130
    %v132 = vpop.f32.mrb[0].mxu0
    %v133 = vadd.f32 %v49, %v132
    %v134 = vpop.f32.mrb[0].mxu0
    %v135 = vadd.f32 %v49, %v134
    %136 = vdwg.mxu0
    %v137 = vmax.f32 %v119, 0.0
    %v138 = vmax.f32 %v121, 0.0
    %v139 = vmax.f32 %v123, 0.0
    %v140 = vmax.f32 %v125, 0.0
    %v141 = vmax.f32 %v129, 0.0
    %v142 = vmax.f32 %v131, 0.0
    %v143 = vmax.f32 %v133, 0.0
    %v144 = vmax.f32 %v135, 0.0
    %v145 = vld [vmem:[%s3] sm:$0xf]
    %v146 = vpack.c.bf16 %v139, %v137
    %v147 = vpack.c.bf16 %v140, %v138
    %v148 = vpack.c.bf16 %v143, %v141
    %v149 = vpack.c.bf16 %v144, %v142
    %v150 = vld [vmem:[%s4] sm:$0xff]
    %152 = vset.pattern.permute.xlu0 0
    %153 = vperm.xlu0 %152, %v150
    %v154 = vpop.permute.xlu0 %153
    %vm156 = vcmask 261120
    %v158 = vsel %vm156, %v145, 0
    %160 = vmatprep.subr.bf16.mxu0 %v147
    %161 = vmatpush1.bf16.msra.mxu0 %v146
    %162 = vmatprep.subr.bf16.mxu0 %v149
    %163 = vmatpush1.bf16.msra.mxu0 %v148
    %164 = vmatprep.subr.bf16.mxu0 0
    %165 = vmatpush1.bf16.msra.mxu0 0
    %166 = vmatprep.subr.bf16.mxu0 0
    %167 = vmatpush1.bf16.msra.mxu0 0
    %168 = vmatprep.subr.bf16.mxu0 0
    %169 = vmatpush1.bf16.msra.mxu0 0
    %170 = vmatprep.subr.bf16.mxu0 0
    %171 = vmatpush1.bf16.msra.mxu0 0
    %172 = vmatprep.subr.bf16.mxu0 0
    %173 = vmatpush1.bf16.msra.mxu0 0
    %174 = vmatprep.subr.bf16.mxu0 0
    %175 = vmatpush1.bf16.msra.mxu0 0
    %176 = vmatprep.subr.bf16.mxu0 0
    %177 = vmatpush1.bf16.msra.mxu0 0
    %178 = vmatprep.subr.bf16.mxu0 0
    %179 = vmatpush1.bf16.msra.mxu0 0
    %180 = vmatprep.subr.bf16.mxu0 0
    %181 = vmatpush1.bf16.msra.mxu0 0
    %182 = vmatprep.subr.bf16.mxu0 0
    %183 = vmatpush1.bf16.msra.mxu0 0
    %184 = vmatprep.subr.bf16.mxu0 0
    %185 = vmatpush1.bf16.msra.mxu0 0
    %186 = vmatprep.subr.bf16.mxu0 0
    %187 = vmatpush1.bf16.msra.mxu0 0
    %188 = vmatprep.subr.bf16.mxu0 0
    %189 = vmatpush1.bf16.msra.mxu0 0
    %190 = vmatprep.subr.bf16.mxu0 0
    %191 = vmatpush1.bf16.msra.mxu0 0
    %192 = vmatprep.mubr.bf16.mxu0 0
    %193 = vmatmul.mubr.bf16.gmra.mrb[0].mxu0 %v158
    %v194 = vpop.f32.mrb[0].mxu0
    %v195 = vadd.f32 %v154, %v194
    %v196 = vpop.f32.mrb[0].mxu0
    %v197 = vadd.f32 %v154, %v196
    %v198 = vpop.f32.mrb[0].mxu0
    %v199 = vpop.f32.mrb[0].mxu0
    %200 = vdwg.mxu0
    %201 = vst [vmem:[#allocation2] sm:$0xff] %v195
    %202 = vst [vmem:[#allocation2 + $0x8] sm:$0xff] %v197
    // Predicated region
    $region22: #{mlp_forward_t.1} parent=1 // pred_check
      _
    $region23: #{mlp_forward_t.1} parent=1 // pred_check_branch
      %204 = sbr.rel (0) target = $region25
    $region24: #{mlp_forward_t.1} parent=1 // pred_region
      %s206 = ssub.s32 256, 256
      %207 = vsyncadd [#allocation3], %s206
      %s209 = sshll.u32 [#allocation2], 4
      %s210 = int_to_ptr.vmem [resolvable:$true] %s209
      %212 = dma.vmem_to_hbm [thread:$0]  %s210, 256, %s5, [#allocation3]
    $region25: #{mlp_forward_t.1} parent=1 // pred_fallthru
      _
    // Predicated region
    $region26: #{mlp_forward_t.1} parent=1 // pred_check
      _
    $region27: #{mlp_forward_t.1} parent=1 // pred_check_branch
      %214 = sbr.rel (0) target = $region29
    $region28: #{mlp_forward_t.1} parent=1 // pred_region
      %215 = dma.done [#allocation3], 256
    $region29: #{mlp_forward_t.1} parent=1 // pred_fallthru
      _
    %216 = vsyncpa [#allocation3], 1

</llo_original>
